<compile_context>
chip_gen: v7x
topology: tpu7x:2x2x1
jax: 0.10.0
libtpu: 0.0.40
codegen_flags: <defaults>
</compile_context>

<pallas_src>
import jax
import jax.numpy as jnp
from jax.experimental import pallas as pl
from jax.experimental.pallas import tpu as pltpu


def _copy_block_kernel(x_ref, z_ref):
    # Pure block copy: the 3x3 replication lives in the output index_map.
    z_ref[...] = x_ref[...]


def _pick_tb(B, C, W, itemsize, target_bytes=4 << 20):
    """Largest TB that divides B with TB*C*W*itemsize <= target_bytes (>=1)."""
    block_bytes = C * W * itemsize
    max_tb = max(1, target_bytes // max(1, block_bytes))
    tb = 1
    for cand in range(1, B + 1):
        if B % cand == 0 and cand <= max_tb:
            tb = cand
    return tb


def model_forward_pallas(x):
    B, C, W = x.shape
    itemsize = x.dtype.itemsize
    TB = _pick_tb(B, C, W, itemsize)

    out_shape = jax.ShapeDtypeStruct((B, 3 * C, 3 * W), x.dtype)

    # Pure bandwidth kernel: read x once, write 9x its bytes.
    cost = pl.CostEstimate(
        flops=0,
        transcendentals=0,
        bytes_accessed=10 * x.size * itemsize,
    )

    return pl.pallas_call(
        _copy_block_kernel,
        out_shape=out_shape,
        grid=(B // TB, 3, 3),
        # Input block index is independent of (i, j): with (i, j) innermost,
        # Pallas detects the unchanged block index and skips the re-fetch.
        in_specs=[pl.BlockSpec((TB, C, W), lambda b, i, j: (b, 0, 0))],
        # Output block walks the 3x3 replication pattern.
        out_specs=pl.BlockSpec((TB, C, W), lambda b, i, j: (b, i, j)),
        compiler_params=pltpu.CompilerParams(
            dimension_semantics=("parallel", "parallel", "parallel"),
        ),
        cost_estimate=cost,
    )(x)


def model_forward(x, *, force_pallas=False):
    """Matches Model.forward for rank-3 tensors: tile(x, (1, 3, 3)).

    Dispatch: kernel path only when the output blocks are sublane/lane aligned
    (C % 8 == 0, W % 128 == 0) and the tensor is big enough to beat launch
    overhead; otherwise plain XLA tile (fused broadcast).
    """
    if x.ndim == 0:
        # Scalar branch of the original forward: y = x*x ; z = y.sin()
        return jnp.sin(x * x)

    B, C, W = x.shape
    aligned = (C % 8 == 0) and (W % 128 == 0)
    big_enough = x.size * x.dtype.itemsize >= (1 << 20)
    if aligned and (big_enough or force_pallas):
        return model_forward_pallas(x)
    return jnp.tile(x, (1, 3, 3))


if __name__ == "__main__":
    key = jax.random.PRNGKey(0)
    # Small, lane/sublane aligned rank-3 shape (so the kernel path's output
    # blocks satisfy the (8, 128) rule and stores are unmasked).
    x = jax.random.normal(key, (2, 8, 128), dtype=jnp.float32)

    # Force the Pallas path so the kernel itself is exercised on TPU.
    z = model_forward(x, force_pallas=True)
    jax.block_until_ready(z)

    # Reference: torch.cat x3 along dim1 then dim2 == tile(x, (1, 3, 3))
    ref = jnp.tile(x, (1, 3, 3))
    assert z.shape == (2, 24, 384), z.shape
    assert jnp.allclose(z, ref), "mismatch vs reference"

    print("KERNEL_OK")
</pallas_src>

<mosaic_0001>
module attributes {stable_mosaic.version = 11 : i64} {
  func.func @_copy_block_kernel(%arg0: i32, %arg1: i32, %arg2: i32, %arg3: memref<2x8x128xf32, #tpu.memory_space<vmem>>, %arg4: memref<2x8x128xf32, #tpu.memory_space<vmem>>) attributes {dimension_semantics = [#tpu.dimension_semantics<parallel>, #tpu.dimension_semantics<parallel>, #tpu.dimension_semantics<parallel>], iteration_bounds = array<i64: 1, 3, 3>, scalar_prefetch = 0 : i64, scratch_operands = 0 : i64, tpu.core_type = #tpu.core_type<tc>, window_params = [{transform_indices = @transform_0, window_bounds = array<i64: 2, 8, 128>}, {transform_indices = @transform_1, window_bounds = array<i64: 2, 8, 128>}]} {
    %c0 = arith.constant 0 : index
    %c0_0 = arith.constant 0 : index
    %c0_1 = arith.constant 0 : index
    %0 = vector.load %arg3[%c0, %c0_0, %c0_1] : memref<2x8x128xf32, #tpu.memory_space<vmem>>, vector<2x8x128xf32>
    %c0_2 = arith.constant 0 : index
    %c0_3 = arith.constant 0 : index
    %c0_4 = arith.constant 0 : index
    %1 = vector.load %arg4[%c0_2, %c0_3, %c0_4] : memref<2x8x128xf32, #tpu.memory_space<vmem>>, vector<2x8x128xf32>
    tpu.vector_store %arg4[%c0_2, %c0_3, %c0_4], %0 {strides = array<i32>} : memref<2x8x128xf32, #tpu.memory_space<vmem>>, vector<2x8x128xf32>,
    return
  }
  func.func @transform_0(%arg0: i32, %arg1: i32, %arg2: i32) -> (i32, i32, i32) {
    %c0_i32 = arith.constant 0 : i32
    %c0_i32_0 = arith.constant 0 : i32
    %c0_i32_1 = arith.constant 0 : i32
    return %arg0, %c0_i32, %c0_i32_0 : i32, i32, i32
  }
  func.func @transform_1(%arg0: i32, %arg1: i32, %arg2: i32) -> (i32, i32, i32) {
    %c0_i32 = arith.constant 0 : i32
    return %arg0, %arg1, %arg2 : i32, i32, i32
  }
}

</mosaic_0001>

<llo_original>
// kernel: tpu_custom_call.1
$region0: #{tpu_custom_call.1}
  #allocation0 [shape = 'u32[]', space=smem, size = 0x4, offset = 0x4, fixed_abs, tag = 'smem constant byte address 0x4 - core index']
  #allocation1 [shape = 'u32[144,128]{1,0:T(1,128)}', space=vmem, size = 0x12000, scoped, tag = 'internal scratch']
  %s0 = inlined_call_operand.hbm [shape: f32[2,8,128], index: 0, kind: input, shape index: {}]
  %s1 = inlined_call_operand.hbm [shape: f32[2,24,384], index: 1, kind: output, shape index: {}]
  %s2 = sld [smem:[#allocation0]]
  $region41: #{tpu_custom_call.1} parent=0
    _
  %s4 = ssub.s32 1, %s2
  %s5 = scalar_select 0, %s4, %s2
  $region1: #{tpu_custom_call.1} parent=0
    #allocation2 [shape = 'u8[8192]{0}', space=vmem, size = 0x2000, scoped, tag = 'input window, operand 0, single buffered']
    #allocation3 [shape = 's32[2]{0}', space=sflag, size = 0x8, scoped, tag = 'scoped memory for tpu_custom_call.1']
    #allocation4 [shape = 's32[2]{0}', space=sflag, size = 0x8, scoped, tag = 'scoped memory for tpu_custom_call.1']
    #allocation5 [shape = 'u8[16384]{0}', space=vmem, size = 0x4000, scoped, tag = 'output window, operand 0']
    %6 = vsyncpa [#allocation3], 0
    %7 = vsyncpa [#allocation4], 0
    %s8 = scalar_lea.sflag [#allocation4], 1
    %9 = vsyncpa %s8, 0
    loop: start=0, step=1, limit=11
    $region2: #{tpu_custom_call.1} parent=1 // loop_pre_header
      _
    $region3: #{tpu_custom_call.1} parent=1 // loop_header
      %s11 = sphi 0, %s15
      %p12 = scmp.ge.s32.totalorder %s11, 11
      %s18 = sphi 0, %s37
      %s19 = sphi 0, %s33
      %s20 = sphi 0, %s29
      %s21 = sphi 0, %s18
      %s22 = sphi 0, %s19
      %s23 = sphi 0, %s20
      %s24 = sphi 0, %s21
      %s25 = sphi 0, %s22
      %s26 = sphi 0, %s23
      %s40 = sphi 0, %s42
      %s43 = sphi 0, %s40
      %s44 = sphi 0, %s43
      %s60 = sphi 0, %s44
      %s70 = sphi 0, %s72
      %s73 = sphi 0, %s70
      %s74 = sphi 0, %s73
      %s90 = sphi 0, %s74
    $region4: #{tpu_custom_call.1} parent=1 // loop_header_branch
      %14 = sbr.rel (%p12) target = $region8
    $region5: #{tpu_custom_call.1} parent=1 // loop_body
      %s16 = ssub.s32 %s11, 1
      %s17 = ssub.s32 %s11, 2
      %s27 = sadd.s32 1, %s20
      %p28 = scmp.ge.s32.totalorder %s27, 3
      %s29 = scalar_select %p28, 0, %s27
      %s30 = sadd.s32 1, %s19
      %s31 = scalar_select %p28, %s30, %s19
      %p32 = scmp.ge.s32.totalorder %s31, 3
      %s33 = scalar_select %p32, 0, %s31
      %s34 = sadd.s32 1, %s18
      %s35 = scalar_select %p32, %s34, %s18
      %p36 = scmp.ge.s32.totalorder %s35, 1
      %s37 = scalar_select %p36, 0, %s35
      %s38 = ssub.s32 %s18, %s37
      %p39 = scmp.eq.s32.totalorder %s38, 0
      %s41 = sadd.s32 %s40, 1
      %s42 = scalar_select %p39, %s40, %s41
      %p45 = pneg %p39
      %p46 = scmp.eq.s32.totalorder %s11, 8
      %p47 = por %p45, %p46
      %p48 = scmp.ne.s32.totalorder %s40, %s43
      %p49 = scmp.eq.s32.totalorder %s11, 0
      %p50 = por %p48, %p49
      %p51 = scmp.ne.s32.totalorder %s40, %s43
      %p52 = scmp.eq.s32.totalorder %s16, 8
      %p53 = por %p51, %p52
      %p54 = scmp.ne.s32.totalorder %s43, %s44
      %p55 = scmp.eq.s32.totalorder %s16, 0
      %p56 = por %p54, %p55
      %p57 = scmp.ne.s32.totalorder %s43, %s44
      %p58 = scmp.eq.s32.totalorder %s17, 8
      %p59 = por %p57, %p58
      %p61 = scmp.ne.s32.totalorder %s44, %s60
      %p62 = scmp.eq.s32.totalorder %s17, 0
      %p63 = por %p61, %p62
      %s64 = ssub.s32 %s18, %s37
      %s65 = ssub.s32 %s19, %s33
      %s66 = sor.u32 %s64, %s65
      %s67 = ssub.s32 %s20, %s29
      %s68 = sor.u32 %s66, %s67
      %p69 = scmp.eq.s32.totalorder %s68, 0
      %s71 = sadd.s32 %s70, 1
      %s72 = scalar_select %p69, %s70, %s71
      %p75 = pneg %p69
      %p76 = scmp.eq.s32.totalorder %s11, 8
      %p77 = por %p75, %p76
      %p78 = scmp.ne.s32.totalorder %s70, %s73
      %p79 = scmp.eq.s32.totalorder %s11, 0
      %p80 = por %p78, %p79
      %p81 = scmp.ne.s32.totalorder %s70, %s73
      %p82 = scmp.eq.s32.totalorder %s16, 8
      %p83 = por %p81, %p82
      %p84 = scmp.ne.s32.totalorder %s73, %s74
      %p85 = scmp.eq.s32.totalorder %s16, 0
      %p86 = por %p84, %p85
      %p87 = scmp.ne.s32.totalorder %s73, %s74
      %p88 = scmp.eq.s32.totalorder %s17, 8
      %p89 = por %p87, %p88
      %p91 = scmp.ne.s32.totalorder %s74, %s90
      %p92 = scmp.eq.s32.totalorder %s17, 0
      %p93 = por %p91, %p92
      %p94 = scmp.le.s32.totalorder 1, %s11
      %p95 = scmp.lt.s32.totalorder %s11, 10
      %p96 = pnand %p94, %p95
      %p97 = pneg %p96
      // Predicated region
      $region9: #{tpu_custom_call.1} parent=5 // pred_check
        _
      $region10: #{tpu_custom_call.1} parent=5 // pred_check_branch
        %99 = sbr.rel (%p96) target = $region12
      $region11: #{tpu_custom_call.1} parent=5 // pred_region
        %s100 = ssub.s32 %s11, 1
        // Predicated region
        $region13: #{tpu_custom_call.1} parent=11 // pred_check
          %p101 = pneg %p56
        $region14: #{tpu_custom_call.1} parent=11 // pred_check_branch
          %103 = sbr.rel (%p101) target = $region16
        $region15: #{tpu_custom_call.1} parent=11 // pred_region
          %s104 = smul.u32 2, %s21
          %s106 = ssub.s32 256, 256
          %107 = vsyncadd [#allocation3], %s106
          %s108 = smul.addr %s104, 128
          %s109 = scalar_lea.hbm %s0, %s108
          %s110 = sshll.u32 [#allocation2], 4
          %s111 = int_to_ptr.vmem [resolvable:$true] %s110
          %116 = dma.hbm_to_vmem [thread:$0]  %s109, 256, %s111, [#allocation3], 128, 128, 8
        $region16: #{tpu_custom_call.1} parent=11 // pred_fallthru
          _
      $region12: #{tpu_custom_call.1} parent=5 // pred_fallthru
        _
      %p117 = scmp.lt.s32.totalorder %s11, 9
      // Predicated region
      $region17: #{tpu_custom_call.1} parent=5 // pred_check
        %p118 = pneg %p117
      $region18: #{tpu_custom_call.1} parent=5 // pred_check_branch
        %120 = sbr.rel (%p118) target = $region20
      $region19: #{tpu_custom_call.1} parent=5 // pred_region
        _
      $region20: #{tpu_custom_call.1} parent=5 // pred_fallthru
        _
      %p121 = scmp.le.s32.totalorder 1, %s11
      %p122 = scmp.lt.s32.totalorder %s11, 10
      %p123 = pnand %p121, %p122
      %p124 = pneg %p123
      // Predicated region
      $region21: #{tpu_custom_call.1} parent=5 // pred_check
        _
      $region22: #{tpu_custom_call.1} parent=5 // pred_check_branch
        %126 = sbr.rel (%p123) target = $region24
      $region23: #{tpu_custom_call.1} parent=5 // pred_region
        %s127 = ssub.s32 %s11, 1
        // Predicated region
        $region25: #{tpu_custom_call.1} parent=23 // pred_check
          %p128 = pneg %p56
        $region26: #{tpu_custom_call.1} parent=23 // pred_check_branch
          %130 = sbr.rel (%p128) target = $region28
        $region27: #{tpu_custom_call.1} parent=23 // pred_region
          %131 = dma.done [#allocation3], 256
        $region28: #{tpu_custom_call.1} parent=23 // pred_fallthru
          _
        %p132 = pneg %p56
        %p133 = pneg %p53
        %p134 = pneg %p86
        %p135 = pneg %p83
        %s136 = sand.u32 %s73, 1
        %s137 = scalar_lea.sflag [#allocation4], %s136
        %s138 = sand.u32 %s73, 1
        %s139 = smul.addr %s138, 16
        %s140 = scalar_lea.vmem [#allocation5], %s139
        %s141 = smul.u32 2, %s21
        %s142 = smul.u32 2, %s21
        %v143 = vld [vmem:[#allocation2] sm:$0xff]
        %v144 = vld [vmem:[#allocation2 + $0x8] sm:$0xff]
        %145 = vst [vmem:[%s140] sm:$0xff] %v143
        %146 = vst [vmem:[%s140 + $0x8] sm:$0xff] %v144
        %s147 = sand.u32 %s73, 1
        %s148 = scalar_lea.sflag [#allocation4], %s147
        %s149 = sand.u32 %s73, 1
        %s150 = smul.addr %s149, 16
        %s151 = scalar_lea.vmem [#allocation5], %s150
        // Predicated region
        $region29: #{tpu_custom_call.1} parent=23 // pred_check
          %p152 = pneg %p83
        $region30: #{tpu_custom_call.1} parent=23 // pred_check_branch
          %154 = sbr.rel (%p152) target = $region32
        $region31: #{tpu_custom_call.1} parent=23 // pred_region
          %s155 = smul.u32 2, %s21
          %s157 = ssub.s32 256, 256
          %158 = vsyncadd %s148, %s157
          %s159 = smul.addr %s22, 3
          %s160 = sadd.s32 %s23, %s159
          %s161 = smul.addr %s155, 9
          %s162 = sadd.s32 %s160, %s161
          %s163 = smul.addr %s162, 128
          %s164 = scalar_lea.hbm %s1, %s163
          %s165 = sshll.u32 %s151, 4
          %s166 = int_to_ptr.vmem [resolvable:$true] %s165
          %171 = dma.vmem_to_hbm [thread:$0]  %s166, 256, %s164, %s148, 128, 1152, 8
        $region32: #{tpu_custom_call.1} parent=23 // pred_fallthru
          _
      $region24: #{tpu_custom_call.1} parent=5 // pred_fallthru
        _
      %p172 = scmp.le.s32.totalorder 2, %s11
      // Predicated region
      $region33: #{tpu_custom_call.1} parent=5 // pred_check
        %p173 = pneg %p172
      $region34: #{tpu_custom_call.1} parent=5 // pred_check_branch
        %175 = sbr.rel (%p173) target = $region36
      $region35: #{tpu_custom_call.1} parent=5 // pred_region
        %s176 = ssub.s32 %s11, 2
        // Predicated region
        $region37: #{tpu_custom_call.1} parent=35 // pred_check
          %p177 = pneg %p89
        $region38: #{tpu_custom_call.1} parent=35 // pred_check_branch
          %179 = sbr.rel (%p177) target = $region40
        $region39: #{tpu_custom_call.1} parent=35 // pred_region
          %s180 = sand.u32 %s74, 1
          %s181 = scalar_lea.sflag [#allocation4], %s180
          %s182 = sand.u32 %s74, 1
          %s183 = smul.addr %s182, 16
          %s184 = scalar_lea.vmem [#allocation5], %s183
          %185 = dma.done %s181, 256
        $region40: #{tpu_custom_call.1} parent=35 // pred_fallthru
          _
      $region36: #{tpu_custom_call.1} parent=5 // pred_fallthru
        _
    $region6: #{tpu_custom_call.1} parent=1 // loop_footer
      %s15 = sadd.s32 1, %s11
    $region7: #{tpu_custom_call.1} parent=1 // loop_footer_branch
      %10 = sbr.rel target = $region3
    $region8: #{tpu_custom_call.1} parent=1 // loop_exit
      _
    %186 = vsyncpa [#allocation3], 1
    %s187 = scalar_lea.sflag [#allocation3], 1
    %188 = vsyncpa %s187, 1
    %189 = vsyncpa [#allocation4], 1
    %s190 = scalar_lea.sflag [#allocation4], 1
    %191 = vsyncpa %s190, 1

</llo_original>
